<compile_context>
chip_gen: v7x
topology: tpu7x:2x2x1
jax: 0.10.0
libtpu: 0.0.40
codegen_flags: <defaults>
</compile_context>

<pallas_src>
import jax
import jax.numpy as jnp
from jax.experimental import pallas as pl
from jax.experimental.pallas import tpu as pltpu


def _round_up(x, m):
    return (x + m - 1) // m * m


def make_crcnn_kernel(block_b, T_pad, F_pad):
    """Fused conv(all branches) + bias/mask + ReLU + max-pool + FC kernel."""

    def kernel(s_ref, w_ref, bm_ref, fcw_ref, fcb_ref, out_ref):
        # s_ref  : (block_b*T_pad, KD_pad) bf16  shared im2col slab (2-D, lane-dense)
        # w_ref  : (KD_pad, F_pad)         bf16  block-diagonal packed conv weights
        # bm_ref : (T_pad, F_pad)          f32   conv bias where valid, -1e30 elsewhere
        # fcw_ref: (F_pad, Cla_pad)        bf16  FC weight (zero-padded rows/cols)
        # fcb_ref: (1, Cla_pad)            f32   FC bias (zero-padded)
        # out_ref: (block_b, Cla_pad)      f32

        # Single MXU pass for every branch and every tap (contraction = KD_pad).
        r = jnp.dot(s_ref[...], w_ref[...],
                    preferred_element_type=jnp.float32)   # (block_b*T_pad, F_pad) f32

        # Leading-dim split (layout-free, last dim unchanged, T_pad % 8 == 0).
        r = r.reshape(block_b, T_pad, F_pad)

        # Bias + validity mask in one constant add, then ReLU.  Invalid rows /
        # padded columns get -1e30 and clamp to 0, which is max-pool neutral
        # because every branch has >= 1 valid row and ReLU output is >= 0.
        r = jnp.maximum(r + bm_ref[...][None, :, :], 0.0)

        pooled = jnp.max(r, axis=1)                        # (block_b, F_pad) f32

        # Single final FC matmul + bias (dropout2 = identity at eval).
        logit = jnp.dot(pooled.astype(jnp.bfloat16), fcw_ref[...],
                        preferred_element_type=jnp.float32)  # (block_b, Cla_pad)
        out_ref[...] = logit + fcb_ref[...]

    return kernel


def crcnn_forward(x_idx, pos_idx, params, Ks):
    embed_w, posembed_w, conv_ws, conv_bs, fc_w, fc_b = params
    B, L = x_idx.shape
    Dim = embed_w.shape[1]
    Pos_dim = posembed_w.shape[1]
    D = Dim + 2 * Pos_dim
    Knum = conv_ws[0].shape[2]
    Cla = fc_w.shape[1]
    nk = len(Ks)
    F = nk * Knum
    max_K = max(Ks)
    max_pad = (max_K - 1) // 2

    # ---- padded "hardware" sizes (lane-dense / MXU-friendly) ----
    KD = max_K * D
    KD_pad = _round_up(KD, 128)          # e.g. 240 -> 256
    F_pad = _round_up(F, 128)            # e.g.  48 -> 128
    Cla_pad = _round_up(Cla, 128)        # e.g.   4 -> 128

    # Shared im2col slab time extent (largest kernel), padded to full sublanes.
    T_need = max((max_pad - (K - 1) // 2) + (L + 2 * ((K - 1) // 2) - K + 1)
                 for K in Ks)
    T_pad = _round_up(T_need, 8)
    Lp = T_pad + max_K - 1               # padded time length of the features

    # ---- batch tiling ----
    # Small B: one program, block = full batch (keeps (8,128)-rule trivially).
    # Large B: block_b multiple of 8, VMEM-safe (~256 rows -> ~2 MiB slab block,
    # double-buffered well under v7x's 64 MiB VMEM), and >= 2 programs so the
    # "parallel" axis shards across v7x's 2 TensorCores.
    if B <= 16:
        block_b, grid_b = B, 1
    else:
        grid_b = max(pl.cdiv(B, 256), 2)
        block_b = _round_up(pl.cdiv(B, grid_b), 8)
    B_pad = block_b * grid_b

    # ---- glue (plain JAX): embedding gathers, reshape, concat ----
    x = embed_w[x_idx]                                     # (B, L, Dim)
    # dropout1: identity at eval
    p = posembed_w[pos_idx].reshape(B, L, 2 * Pos_dim)     # (B, L, 2*Pos_dim)
    feat = jnp.concatenate([x, p], axis=2)                 # (B, L, D) f32

    # Shared im2col slab at the largest kernel size.  Slab row r, tap k covers
    # feat_p[:, r+k, :]; branch i (kernel K_i, pad_i) is valid on rows
    # [max_pad - pad_i, max_pad - pad_i + L_out_i).
    feat_p = jnp.pad(feat, ((0, B_pad - B),
                            (max_pad, Lp - L - max_pad),
                            (0, 0)))                       # (B_pad, Lp, D)
    slab = jnp.concatenate(
        [feat_p[:, k:k + T_pad, :] for k in range(max_K)],
        axis=2)                                            # (B_pad, T_pad, KD)
    slab = jnp.pad(slab, ((0, 0), (0, 0), (0, KD_pad - KD)))
    slab2d = slab.reshape(B_pad * T_pad, KD_pad).astype(jnp.bfloat16)

    # Block-diagonal packed conv weight: branch i lives in rows [0, K_i*D) and
    # columns [i*Knum, (i+1)*Knum); unused rows / padded columns are zero.
    w_packed = jnp.zeros((KD_pad, F_pad), jnp.float32)
    for i, K in enumerate(Ks):
        w_packed = w_packed.at[:K * D, i * Knum:(i + 1) * Knum].set(
            conv_ws[i].reshape(K * D, Knum))
    w_packed = w_packed.astype(jnp.bfloat16)

    # Precomputed bias/validity constant: conv bias on valid (row, col) cells,
    # -1e30 elsewhere (invalid rows per branch and the F..F_pad padding).
    bias_mask = jnp.full((T_pad, F_pad), -1e30, jnp.float32)
    for i, K in enumerate(Ks):
        pad = (K - 1) // 2
        off = max_pad - pad
        L_out = L + 2 * pad - K + 1
        bias_mask = bias_mask.at[off:off + L_out, i * Knum:(i + 1) * Knum].set(
            jnp.broadcast_to(conv_bs[i][None, :], (L_out, Knum)))

    fcw = (jnp.zeros((F_pad, Cla_pad), jnp.float32)
           .at[:F, :Cla].set(fc_w).astype(jnp.bfloat16))
    fcb = jnp.zeros((1, Cla_pad), jnp.float32).at[0, :Cla].set(fc_b)

    # Advisory cost for XLA scheduling of the surrounding glue.
    flops = 2 * B_pad * T_pad * KD_pad * F_pad + 2 * B_pad * F_pad * Cla_pad
    bytes_accessed = (slab2d.size * 2 + w_packed.size * 2 + bias_mask.size * 4
                      + fcw.size * 2 + fcb.size * 4 + B_pad * Cla_pad * 4)
    cost = pl.CostEstimate(flops=flops, transcendentals=0,
                           bytes_accessed=bytes_accessed)

    kernel = make_crcnn_kernel(block_b, T_pad, F_pad)

    out = pl.pallas_call(
        kernel,
        out_shape=jax.ShapeDtypeStruct((B_pad, Cla_pad), jnp.float32),
        grid=(grid_b,),
        in_specs=[
            pl.BlockSpec((block_b * T_pad, KD_pad), lambda b: (b, 0)),
            pl.BlockSpec((KD_pad, F_pad), lambda b: (0, 0)),
            pl.BlockSpec((T_pad, F_pad), lambda b: (0, 0)),
            pl.BlockSpec((F_pad, Cla_pad), lambda b: (0, 0)),
            pl.BlockSpec((1, Cla_pad), lambda b: (0, 0)),
        ],
        out_specs=pl.BlockSpec((block_b, Cla_pad), lambda b: (b, 0)),
        compiler_params=pltpu.CompilerParams(
            dimension_semantics=("parallel",),
            vmem_limit_bytes=32 * 1024 * 1024),
        cost_estimate=cost,
    )(slab2d, w_packed, bias_mask, fcw, fcb)

    return out[:B, :Cla]


def reference_forward(x_idx, pos_idx, params, Ks):
    """Pure-JAX f32 reference matching the PyTorch forward (eval mode)."""
    embed_w, posembed_w, conv_ws, conv_bs, fc_w, fc_b = params
    B, L = x_idx.shape
    Pos_dim = posembed_w.shape[1]
    x = embed_w[x_idx]
    p = posembed_w[pos_idx].reshape(B, L, 2 * Pos_dim)
    feat = jnp.concatenate([x, p], axis=2)
    pooled = []
    for i, K in enumerate(Ks):
        pad = (K - 1) // 2
        xp = jnp.pad(feat, ((0, 0), (pad, pad), (0, 0)))
        L_out = L + 2 * pad - K + 1
        acc = conv_bs[i][None, None, :]
        for k in range(K):
            acc = acc + jnp.einsum('bld,dc->blc', xp[:, k:k + L_out, :],
                                   conv_ws[i][k])
        acc = jnp.maximum(acc, 0.0)
        pooled.append(jnp.max(acc, axis=1))
    f = jnp.concatenate(pooled, axis=1)
    return f @ fc_w + fc_b[None, :]


if __name__ == "__main__":
    # Config (small, consistent with the module's __init__ / forward).
    B, L = 2, 8
    Vocab, PosVocab = 50, 20
    Dim, Pos_dim = 32, 8
    Knum = 16
    Ks = (3, 4, 5)
    Cla = 4
    D = Dim + 2 * Pos_dim
    F_total = len(Ks) * Knum

    key = jax.random.PRNGKey(0)
    keys = jax.random.split(key, 16)

    # Deterministic parameter init (synthetic; shapes mirror the nn.Module).
    embed_w = jax.random.normal(keys[0], (Vocab, Dim), jnp.float32) * 0.1
    posembed_w = jax.random.normal(keys[1], (PosVocab, Pos_dim), jnp.float32) * 0.1
    conv_ws, conv_bs = [], []
    for i, K in enumerate(Ks):
        # PyTorch Conv2d weight: (Knum, 1, K, D) -> transpose to (K, D, Knum)
        w_torch = jax.random.normal(keys[2 + i], (Knum, 1, K, D), jnp.float32) * 0.1
        conv_ws.append(jnp.transpose(w_torch[:, 0], (1, 2, 0)))
        conv_bs.append(jax.random.normal(keys[6 + i], (Knum,), jnp.float32) * 0.1)
    # PyTorch Linear weight: (Cla, F_total) -> transpose to (F_total, Cla)
    fc_w = jnp.transpose(
        jax.random.normal(keys[10], (Cla, F_total), jnp.float32) * 0.1)
    fc_b = jax.random.normal(keys[11], (Cla,), jnp.float32) * 0.1

    params = (embed_w, posembed_w, conv_ws, conv_bs, fc_w, fc_b)

    # Deterministic example inputs: cx = (token ids, position ids).
    x_idx = jax.random.randint(keys[12], (B, L), 0, Vocab, jnp.int32)
    pos_idx = jax.random.randint(keys[13], (B, 2 * L), 0, PosVocab, jnp.int32)

    logits = crcnn_forward(x_idx, pos_idx, params, Ks)
    logits = jax.block_until_ready(logits)

    ref = reference_forward(x_idx, pos_idx, params, Ks)
    assert logits.shape == (B, Cla)
    # Tolerance accounts for bf16 MXU operands (f32 accumulation) vs f32 ref.
    assert jnp.allclose(logits, ref, rtol=2e-2, atol=2e-2), (
        f"max abs diff {jnp.max(jnp.abs(logits - ref))}")

    print("KERNEL_OK")
</pallas_src>

<mosaic_0001>
module attributes {stable_mosaic.version = 11 : i64} {
  func.func @kernel(%arg0: i32, %arg1: memref<32x256xbf16, #tpu.memory_space<vmem>>, %arg2: memref<256x128xbf16, #tpu.memory_space<vmem>>, %arg3: memref<16x128xf32, #tpu.memory_space<vmem>>, %arg4: memref<128x128xbf16, #tpu.memory_space<vmem>>, %arg5: memref<1x128xf32, #tpu.memory_space<vmem>>, %arg6: memref<2x128xf32, #tpu.memory_space<vmem>>) attributes {dimension_semantics = [#tpu.dimension_semantics<parallel>], iteration_bounds = array<i64: 1>, scalar_prefetch = 0 : i64, scratch_operands = 0 : i64, tpu.core_type = #tpu.core_type<tc>, window_params = [{transform_indices = @transform_0, window_bounds = array<i64: 32, 256>}, {pipeline_mode = #tpu.pipeline_mode<synchronous>, transform_indices = @transform_1, window_bounds = array<i64: 256, 128>}, {pipeline_mode = #tpu.pipeline_mode<synchronous>, transform_indices = @transform_2, window_bounds = array<i64: 16, 128>}, {pipeline_mode = #tpu.pipeline_mode<synchronous>, transform_indices = @transform_3, window_bounds = array<i64: 128, 128>}, {pipeline_mode = #tpu.pipeline_mode<synchronous>, transform_indices = @transform_4, window_bounds = array<i64: 1, 128>}, {transform_indices = @transform_5, window_bounds = array<i64: 2, 128>}]} {
    %c0 = arith.constant 0 : index
    %c0_0 = arith.constant 0 : index
    %0 = vector.load %arg1[%c0, %c0_0] : memref<32x256xbf16, #tpu.memory_space<vmem>>, vector<32x256xbf16>
    %c0_1 = arith.constant 0 : index
    %c0_2 = arith.constant 0 : index
    %1 = vector.load %arg2[%c0_1, %c0_2] : memref<256x128xbf16, #tpu.memory_space<vmem>>, vector<256x128xbf16>
    %cst = arith.constant dense<0.000000e+00> : vector<32x128xf32>
    %2 = tpu.matmul %0, %1, %cst {dimension_numbers = #tpu.dot_dimension_numbers<[1], [0], [0], [1], [0, 0, 1, 1], [], []>} : vector<32x256xbf16>, vector<256x128xbf16>, vector<32x128xf32> -> vector<32x128xf32>
    %3 = vector.shape_cast %2 : vector<32x128xf32> to vector<2x16x128xf32>
    %c0_3 = arith.constant 0 : index
    %c0_4 = arith.constant 0 : index
    %4 = vector.load %arg3[%c0_3, %c0_4] : memref<16x128xf32, #tpu.memory_space<vmem>>, vector<16x128xf32>
    %5 = vector.shape_cast %4 : vector<16x128xf32> to vector<1x16x128xf32>
    %6 = vector.broadcast %5 : vector<1x16x128xf32> to vector<2x16x128xf32>
    %7 = arith.addf %3, %6 : vector<2x16x128xf32>
    %cst_5 = arith.constant 0.000000e+00 : f32
    %8 = vector.broadcast %cst_5 : f32 to vector<2x16x128xf32>
    %9 = arith.maximumf %7, %8 : vector<2x16x128xf32>
    %cst_6 = arith.constant dense<0xFF800000> : vector<2x128xf32>
    %10 = vector.multi_reduction <maximumf>, %9, %cst_6 [1] : vector<2x16x128xf32> to vector<2x128xf32>
    %11 = arith.truncf %10 : vector<2x128xf32> to vector<2x128xbf16>
    %c0_7 = arith.constant 0 : index
    %c0_8 = arith.constant 0 : index
    %12 = vector.load %arg4[%c0_7, %c0_8] : memref<128x128xbf16, #tpu.memory_space<vmem>>, vector<128x128xbf16>
    %cst_9 = arith.constant dense<0.000000e+00> : vector<2x128xf32>
    %13 = tpu.matmul %11, %12, %cst_9 {dimension_numbers = #tpu.dot_dimension_numbers<[1], [0], [0], [1], [0, 0, 1, 1], [], []>} : vector<2x128xbf16>, vector<128x128xbf16>, vector<2x128xf32> -> vector<2x128xf32>
    %c0_10 = arith.constant 0 : index
    %c0_11 = arith.constant 0 : index
    %14 = vector.load %arg5[%c0_10, %c0_11] : memref<1x128xf32, #tpu.memory_space<vmem>>, vector<1x128xf32>
    %15 = vector.broadcast %14 : vector<1x128xf32> to vector<2x128xf32>
    %16 = arith.addf %13, %15 : vector<2x128xf32>
    %c0_12 = arith.constant 0 : index
    %c0_13 = arith.constant 0 : index
    %17 = vector.load %arg6[%c0_12, %c0_13] : memref<2x128xf32, #tpu.memory_space<vmem>>, vector<2x128xf32>
    tpu.vector_store %arg6[%c0_12, %c0_13], %16 {strides = array<i32>} : memref<2x128xf32, #tpu.memory_space<vmem>>, vector<2x128xf32>,
    return
  }
  func.func @transform_0(%arg0: i32) -> (i32, i32) {
    %c0_i32 = arith.constant 0 : i32
    %c0_i32_0 = arith.constant 0 : i32
    return %arg0, %c0_i32 : i32, i32
  }
  func.func @transform_1(%arg0: i32) -> (i32, i32) {
    %c0_i32 = arith.constant 0 : i32
    %c0_i32_0 = arith.constant 0 : i32
    %c0_i32_1 = arith.constant 0 : i32
    return %c0_i32, %c0_i32_0 : i32, i32
  }
  func.func @transform_2(%arg0: i32) -> (i32, i32) {
    %c0_i32 = arith.constant 0 : i32
    %c0_i32_0 = arith.constant 0 : i32
    %c0_i32_1 = arith.constant 0 : i32
    return %c0_i32, %c0_i32_0 : i32, i32
  }
  func.func @transform_3(%arg0: i32) -> (i32, i32) {
    %c0_i32 = arith.constant 0 : i32
    %c0_i32_0 = arith.constant 0 : i32
    %c0_i32_1 = arith.constant 0 : i32
    return %c0_i32, %c0_i32_0 : i32, i32
  }
  func.func @transform_4(%arg0: i32) -> (i32, i32) {
    %c0_i32 = arith.constant 0 : i32
    %c0_i32_0 = arith.constant 0 : i32
    %c0_i32_1 = arith.constant 0 : i32
    return %c0_i32, %c0_i32_0 : i32, i32
  }
  func.func @transform_5(%arg0: i32) -> (i32, i32) {
    %c0_i32 = arith.constant 0 : i32
    %c0_i32_0 = arith.constant 0 : i32
    return %arg0, %c0_i32 : i32, i32
  }
}

</mosaic_0001>

<llo_original>
// kernel: tpu_custom_call.1
$region0: #{tpu_custom_call.1}
  #allocation0 [shape = 'u32[]', space=smem, size = 0x4, offset = 0x4, fixed_abs, tag = 'smem constant byte address 0x4 - core index']
  #allocation1 [shape = 'u32[144,128]{1,0:T(1,128)}', space=vmem, size = 0x12000, scoped, tag = 'internal scratch']
  %s0 = inlined_call_operand.hbm [shape: bf16[32,256], index: 0, kind: input, shape index: {}]
  %s1 = inlined_call_operand.hbm [shape: bf16[256,128], index: 1, kind: input, shape index: {}]
  %s2 = inlined_call_operand.hbm [shape: f32[16,128], index: 2, kind: input, shape index: {}]
  %s3 = inlined_call_operand.hbm [shape: bf16[128,128], index: 3, kind: input, shape index: {}]
  %s4 = inlined_call_operand.vmem [shape: f32[1,128], index: 4, kind: input, shape index: {}]
  %s5 = inlined_call_operand.hbm [shape: f32[2,128], index: 5, kind: output, shape index: {}]
  %s6 = sld [smem:[#allocation0]]
  $region46: #{tpu_custom_call.1} parent=0
    _
  %s8 = ssub.s32 1, %s6
  %s9 = scalar_select 0, %s8, %s6
  $region1: #{tpu_custom_call.1} parent=0
    #allocation2 [shape = 'u8[16384]{0}', space=vmem, size = 0x4000, scoped, tag = 'input window, operand 0, single buffered']
    #allocation3 [shape = 's32[1]{0}', space=sflag, size = 0x4, scoped, tag = 'scoped memory for tpu_custom_call.1']
    #allocation4 [shape = 's32[1]{0}', space=sflag, size = 0x4, scoped, tag = 'scoped memory for tpu_custom_call.1']
    #allocation5 [shape = 'u8[65536]{0}', space=vmem, size = 0x10000, scoped, tag = 'input window, operand 1, single buffered']
    #allocation6 [shape = 's32[1]{0}', space=sflag, size = 0x4, scoped, tag = 'scoped memory for tpu_custom_call.1']
    #allocation7 [shape = 'u8[8192]{0}', space=vmem, size = 0x2000, scoped, tag = 'input window, operand 2, single buffered']
    #allocation8 [shape = 'u8[32768]{0}', space=vmem, size = 0x8000, scoped, tag = 'input window, operand 3, single buffered']
    #allocation9 [shape = 's32[1]{0}', space=sflag, size = 0x4, scoped, tag = 'scoped memory for tpu_custom_call.1']
    #allocation10 [shape = 'u8[1024]{0}', space=vmem, size = 0x400, scoped, tag = 'output window, operand 0, single buffered']
    %10 = vsyncpa [#allocation3], 0
    %11 = vsyncpa [#allocation6], 0
    %12 = vsyncpa [#allocation9], 0
    %13 = vsyncpa [#allocation4], 0
    // Predicated region
    $region2: #{tpu_custom_call.1} parent=1 // pred_check
      _
    $region3: #{tpu_custom_call.1} parent=1 // pred_check_branch
      %15 = sbr.rel (0) target = $region5
    $region4: #{tpu_custom_call.1} parent=1 // pred_region
      %s17 = ssub.s32 512, 512
      %18 = vsyncadd [#allocation3], %s17
      %s19 = sshll.u32 [#allocation2], 4
      %s20 = int_to_ptr.vmem [resolvable:$true] %s19
      %25 = dma.hbm_to_vmem [thread:$0]  %s0, 512, %s20, [#allocation3], 128, 128, 8
    $region5: #{tpu_custom_call.1} parent=1 // pred_fallthru
      _
    // Predicated region
    $region6: #{tpu_custom_call.1} parent=1 // pred_check
      _
    $region7: #{tpu_custom_call.1} parent=1 // pred_check_branch
      %27 = sbr.rel (0) target = $region9
    $region8: #{tpu_custom_call.1} parent=1 // pred_region
      %s29 = ssub.s32 2048, 2048
      %30 = vsyncadd [#allocation6], %s29
      %s31 = sshll.u32 [#allocation5], 4
      %s32 = int_to_ptr.vmem [resolvable:$true] %s31
      %37 = dma.hbm_to_vmem [thread:$0]  %s1, 2048, %s32, [#allocation6], 64, 64, 4
    $region9: #{tpu_custom_call.1} parent=1 // pred_fallthru
      _
    // Predicated region
    $region10: #{tpu_custom_call.1} parent=1 // pred_check
      _
    $region11: #{tpu_custom_call.1} parent=1 // pred_check_branch
      %39 = sbr.rel (0) target = $region13
    $region12: #{tpu_custom_call.1} parent=1 // pred_region
      %s41 = ssub.s32 256, 256
      %42 = vsyncadd [#allocation6], %s41
      %s43 = sshll.u32 [#allocation7], 4
      %s44 = int_to_ptr.vmem [resolvable:$true] %s43
      %49 = dma.hbm_to_vmem [thread:$0]  %s2, 256, %s44, [#allocation6], 128, 128, 8
    $region13: #{tpu_custom_call.1} parent=1 // pred_fallthru
      _
    // Predicated region
    $region14: #{tpu_custom_call.1} parent=1 // pred_check
      _
    $region15: #{tpu_custom_call.1} parent=1 // pred_check_branch
      %51 = sbr.rel (0) target = $region17
    $region16: #{tpu_custom_call.1} parent=1 // pred_region
      %s53 = ssub.s32 1024, 1024
      %54 = vsyncadd [#allocation9], %s53
      %s55 = sshll.u32 [#allocation8], 4
      %s56 = int_to_ptr.vmem [resolvable:$true] %s55
      %61 = dma.hbm_to_vmem [thread:$0]  %s3, 1024, %s56, [#allocation9], 64, 64, 4
    $region17: #{tpu_custom_call.1} parent=1 // pred_fallthru
      _
    // Predicated region
    $region18: #{tpu_custom_call.1} parent=1 // pred_check
      _
    $region19: #{tpu_custom_call.1} parent=1 // pred_check_branch
      %63 = sbr.rel (0) target = $region21
    $region20: #{tpu_custom_call.1} parent=1 // pred_region
      _
    $region21: #{tpu_custom_call.1} parent=1 // pred_fallthru
      _
    // Predicated region
    $region22: #{tpu_custom_call.1} parent=1 // pred_check
      _
    $region23: #{tpu_custom_call.1} parent=1 // pred_check_branch
      %65 = sbr.rel (0) target = $region25
    $region24: #{tpu_custom_call.1} parent=1 // pred_region
      %66 = dma.done [#allocation3], 512
    $region25: #{tpu_custom_call.1} parent=1 // pred_fallthru
      _
    // Predicated region
    $region26: #{tpu_custom_call.1} parent=1 // pred_check
      _
    $region27: #{tpu_custom_call.1} parent=1 // pred_check_branch
      %68 = sbr.rel (0) target = $region29
    $region28: #{tpu_custom_call.1} parent=1 // pred_region
      %69 = dma.done [#allocation6], 2048
    $region29: #{tpu_custom_call.1} parent=1 // pred_fallthru
      _
    // Predicated region
    $region30: #{tpu_custom_call.1} parent=1 // pred_check
      _
    $region31: #{tpu_custom_call.1} parent=1 // pred_check_branch
      %71 = sbr.rel (0) target = $region33
    $region32: #{tpu_custom_call.1} parent=1 // pred_region
      %72 = dma.done [#allocation6], 256
    $region33: #{tpu_custom_call.1} parent=1 // pred_fallthru
      _
    // Predicated region
    $region34: #{tpu_custom_call.1} parent=1 // pred_check
      _
    $region35: #{tpu_custom_call.1} parent=1 // pred_check_branch
      %74 = sbr.rel (0) target = $region37
    $region36: #{tpu_custom_call.1} parent=1 // pred_region
      %75 = dma.done [#allocation9], 1024
    $region37: #{tpu_custom_call.1} parent=1 // pred_fallthru
      _
    %v77 = vld [vmem:[#allocation2] sm:$0xff]
    %v78 = vld [vmem:[#allocation2 + $0x8] sm:$0xff]
    %v79 = vld [vmem:[#allocation2 + $0x10] sm:$0xff]
    %v80 = vld [vmem:[#allocation2 + $0x18] sm:$0xff]
    %v81 = vld [vmem:[#allocation5] sm:$0xf]
    %v82 = vld [vmem:[#allocation5 + $0x4] sm:$0xf]
    %v83 = vld [vmem:[#allocation5 + $0x8] sm:$0xf]
    %v84 = vld [vmem:[#allocation5 + $0xc] sm:$0xf]
    %v85 = vld [vmem:[#allocation5 + $0x10] sm:$0xf]
    %v86 = vld [vmem:[#allocation5 + $0x14] sm:$0xf]
    %v87 = vld [vmem:[#allocation5 + $0x18] sm:$0xf]
    %v88 = vld [vmem:[#allocation5 + $0x1c] sm:$0xf]
    %v89 = vld [vmem:[#allocation5 + $0x20] sm:$0xf]
    %v90 = vld [vmem:[#allocation5 + $0x24] sm:$0xf]
    %v91 = vld [vmem:[#allocation5 + $0x28] sm:$0xf]
    %v92 = vld [vmem:[#allocation5 + $0x2c] sm:$0xf]
    %v93 = vld [vmem:[#allocation5 + $0x30] sm:$0xf]
    %v94 = vld [vmem:[#allocation5 + $0x34] sm:$0xf]
    %v95 = vld [vmem:[#allocation5 + $0x38] sm:$0xf]
    %v96 = vld [vmem:[#allocation5 + $0x3c] sm:$0xf]
    %v97 = vld [vmem:[#allocation5 + $0x40] sm:$0xf]
    %v98 = vld [vmem:[#allocation5 + $0x44] sm:$0xf]
    %v99 = vld [vmem:[#allocation5 + $0x48] sm:$0xf]
    %v100 = vld [vmem:[#allocation5 + $0x4c] sm:$0xf]
    %v101 = vld [vmem:[#allocation5 + $0x50] sm:$0xf]
    %v102 = vld [vmem:[#allocation5 + $0x54] sm:$0xf]
    %v103 = vld [vmem:[#allocation5 + $0x58] sm:$0xf]
    %v104 = vld [vmem:[#allocation5 + $0x5c] sm:$0xf]
    %v105 = vld [vmem:[#allocation5 + $0x60] sm:$0xf]
    %v106 = vld [vmem:[#allocation5 + $0x64] sm:$0xf]
    %v107 = vld [vmem:[#allocation5 + $0x68] sm:$0xf]
    %v108 = vld [vmem:[#allocation5 + $0x6c] sm:$0xf]
    %v109 = vld [vmem:[#allocation5 + $0x70] sm:$0xf]
    %v110 = vld [vmem:[#allocation5 + $0x74] sm:$0xf]
    %v111 = vld [vmem:[#allocation5 + $0x78] sm:$0xf]
    %v112 = vld [vmem:[#allocation5 + $0x7c] sm:$0xf]
    %v117 = vunpack.c.l.b16 %v77
    %v118 = vunpack.c.h.b16 %v77
    %v119 = vunpack.c.l.b16 %v78
    %v120 = vunpack.c.h.b16 %v78
    %v121 = vunpack.c.l.b16 %v79
    %v122 = vunpack.c.h.b16 %v79
    %v123 = vunpack.c.l.b16 %v80
    %v124 = vunpack.c.h.b16 %v80
    %v125 = vpack.c.b16 %v119, %v117
    %v126 = vpack.c.b16 %v120, %v118
    %v127 = vpack.c.b16 %v123, %v121
    %v128 = vpack.c.b16 %v124, %v122
    %v165 = vunpack.c.l.b16 %v81
    %v166 = vunpack.c.l.b16 %v82
    %v167 = vunpack.c.l.b16 %v83
    %v168 = vunpack.c.l.b16 %v84
    %v169 = vunpack.c.l.b16 %v85
    %v170 = vunpack.c.l.b16 %v86
    %v171 = vunpack.c.l.b16 %v87
    %v172 = vunpack.c.l.b16 %v88
    %v173 = vunpack.c.l.b16 %v89
    %v174 = vunpack.c.l.b16 %v90
    %v175 = vunpack.c.l.b16 %v91
    %v176 = vunpack.c.l.b16 %v92
    %v177 = vunpack.c.l.b16 %v93
    %v178 = vunpack.c.l.b16 %v94
    %v179 = vunpack.c.l.b16 %v95
    %v180 = vunpack.c.l.b16 %v96
    %v181 = vunpack.c.l.b16 %v97
    %v182 = vunpack.c.l.b16 %v98
    %v183 = vunpack.c.l.b16 %v99
    %v184 = vunpack.c.l.b16 %v100
    %v185 = vunpack.c.l.b16 %v101
    %v186 = vunpack.c.l.b16 %v102
    %v187 = vunpack.c.l.b16 %v103
    %v188 = vunpack.c.l.b16 %v104
    %v189 = vunpack.c.l.b16 %v105
    %v190 = vunpack.c.l.b16 %v106
    %v191 = vunpack.c.l.b16 %v107
    %v192 = vunpack.c.l.b16 %v108
    %v193 = vunpack.c.l.b16 %v109
    %v194 = vunpack.c.l.b16 %v110
    %v195 = vunpack.c.l.b16 %v111
    %v196 = vunpack.c.l.b16 %v112
    %v197 = vpack.c.b16 %v166, %v165
    %v198 = vpack.c.b16 %v168, %v167
    %v199 = vpack.c.b16 %v170, %v169
    %v200 = vpack.c.b16 %v172, %v171
    %v201 = vpack.c.b16 %v174, %v173
    %v202 = vpack.c.b16 %v176, %v175
    %v203 = vpack.c.b16 %v178, %v177
    %v204 = vpack.c.b16 %v180, %v179
    %v205 = vpack.c.b16 %v182, %v181
    %v206 = vpack.c.b16 %v184, %v183
    %v207 = vpack.c.b16 %v186, %v185
    %v208 = vpack.c.b16 %v188, %v187
    %v209 = vpack.c.b16 %v190, %v189
    %v210 = vpack.c.b16 %v192, %v191
    %v211 = vpack.c.b16 %v194, %v193
    %v212 = vpack.c.b16 %v196, %v195
    %229 = vmatprep.subr.bf16.mxu0 0
    %230 = vmatpush1.bf16.msra.mxu0 %v197
    %231 = vmatprep.subr.bf16.mxu0 0
    %232 = vmatpush1.bf16.msra.mxu0 %v198
    %233 = vmatprep.subr.bf16.mxu0 0
    %234 = vmatpush1.bf16.msra.mxu0 %v199
    %235 = vmatprep.subr.bf16.mxu0 0
    %236 = vmatpush1.bf16.msra.mxu0 %v200
    %237 = vmatprep.subr.bf16.mxu0 0
    %238 = vmatpush1.bf16.msra.mxu0 %v201
    %239 = vmatprep.subr.bf16.mxu0 0
    %240 = vmatpush1.bf16.msra.mxu0 %v202
    %241 = vmatprep.subr.bf16.mxu0 0
    %242 = vmatpush1.bf16.msra.mxu0 %v203
    %243 = vmatprep.subr.bf16.mxu0 0
    %244 = vmatpush1.bf16.msra.mxu0 %v204
    %245 = vmatprep.subr.bf16.mxu0 0
    %246 = vmatpush1.bf16.msra.mxu0 %v205
    %247 = vmatprep.subr.bf16.mxu0 0
    %248 = vmatpush1.bf16.msra.mxu0 %v206
    %249 = vmatprep.subr.bf16.mxu0 0
    %250 = vmatpush1.bf16.msra.mxu0 %v207
    %251 = vmatprep.subr.bf16.mxu0 0
    %252 = vmatpush1.bf16.msra.mxu0 %v208
    %253 = vmatprep.subr.bf16.mxu0 0
    %254 = vmatpush1.bf16.msra.mxu0 %v209
    %255 = vmatprep.subr.bf16.mxu0 0
    %256 = vmatpush1.bf16.msra.mxu0 %v210
    %257 = vmatprep.subr.bf16.mxu0 0
    %258 = vmatpush1.bf16.msra.mxu0 %v211
    %259 = vmatprep.subr.bf16.mxu0 0
    %260 = vmatpush1.bf16.msra.mxu0 %v212
    %261 = vmatprep.mubr.bf16.mxu0 %v126
    %262 = vmatmul.mubr.bf16.gmra.mrb[0].mxu0 %v125
    %v263 = vpop.f32.mrb[0].mxu0
    %v264 = vadd.f32 0.0, %v263
    %v265 = vpop.f32.mrb[0].mxu0
    %v266 = vpop.f32.mrb[0].mxu0
    %v267 = vadd.f32 0.0, %v266
    %v268 = vpop.f32.mrb[0].mxu0
    %269 = vmatprep.mubr.bf16.mxu0 %v128
    %270 = vmatmul.mubr.bf16.gmra.mrb[0].mxu0 %v127
    %v271 = vpop.f32.mrb[0].mxu0
    %v272 = vadd.f32 0.0, %v271
    %v273 = vpop.f32.mrb[0].mxu0
    %v274 = vpop.f32.mrb[0].mxu0
    %v275 = vadd.f32 0.0, %v274
    %v276 = vpop.f32.mrb[0].mxu0
    %277 = vdwg.mxu0
    %v278 = vld [vmem:[#allocation7] sm:$0xff]
    %v279 = vld [vmem:[#allocation7 + $0x8] sm:$0xff]
    %v280 = vadd.f32 %v264, %v278
    %v281 = vadd.f32 %v267, %v279
    %v282 = vadd.f32 %v272, %v278
    %v283 = vadd.f32 %v275, %v279
    %v284 = vmax.f32 %v280, 0.0
    %v285 = vmax.f32 %v281, 0.0
    %v286 = vmax.f32 %v282, 0.0
    %v287 = vmax.f32 %v283, 0.0
    %v288 = vmax.f32 %v284, %v285
    %v289 = vrot.slane %v288, 4
    %v290 = vmax.f32 %v288, %v289
    %v291 = vrot.slane %v290, 2
    %v292 = vmax.f32 %v290, %v291
    %v293 = vrot.slane %v292, 1
    %v294 = vmax.f32 %v292, %v293
    %v295 = vmax.f32 %v286, %v287
    %v296 = vrot.slane %v295, 4
    %v297 = vmax.f32 %v295, %v296
    %v298 = vrot.slane %v297, 2
    %v299 = vmax.f32 %v297, %v298
    %v300 = vrot.slane %v299, 1
    %v301 = vmax.f32 %v299, %v300
    %v302 = vpack.c.bf16 %v294, %v294
    %v303 = vpack.c.bf16 %v301, %v301
    %v304 = vld [vmem:[#allocation8] sm:$0xf]
    %v305 = vld [vmem:[#allocation8 + $0x4] sm:$0xf]
    %v306 = vld [vmem:[#allocation8 + $0x8] sm:$0xf]
    %v307 = vld [vmem:[#allocation8 + $0xc] sm:$0xf]
    %v308 = vld [vmem:[#allocation8 + $0x10] sm:$0xf]
    %v309 = vld [vmem:[#allocation8 + $0x14] sm:$0xf]
    %v310 = vld [vmem:[#allocation8 + $0x18] sm:$0xf]
    %v311 = vld [vmem:[#allocation8 + $0x1c] sm:$0xf]
    %v312 = vld [vmem:[#allocation8 + $0x20] sm:$0xf]
    %v313 = vld [vmem:[#allocation8 + $0x24] sm:$0xf]
    %v314 = vld [vmem:[#allocation8 + $0x28] sm:$0xf]
    %v315 = vld [vmem:[#allocation8 + $0x2c] sm:$0xf]
    %v316 = vld [vmem:[#allocation8 + $0x30] sm:$0xf]
    %v317 = vld [vmem:[#allocation8 + $0x34] sm:$0xf]
    %v318 = vld [vmem:[#allocation8 + $0x38] sm:$0xf]
    %v319 = vld [vmem:[#allocation8 + $0x3c] sm:$0xf]
    %v320 = vld [vmem:[%s4] sm:$0x1]
    %v322 = vlaneseq
    %v323 = vshrl.u32 %v322, 7
    %v324 = vsub.s32 0, %v323
    %v325 = vrot.slane %v320, %v324
    %v329 = vunpack.c.l.b16 %v302
    %v330 = vunpack.c.l.b16 %v303
    %vm331 = vcmask 1041409
    %v332 = vsel %vm331, %v330, %v329
    %v333 = vpack.c.b16 %v332, %v332
    %v351 = vunpack.c.l.b16 %v304
    %v352 = vunpack.c.l.b16 %v305
    %v353 = vunpack.c.l.b16 %v306
    %v354 = vunpack.c.l.b16 %v307
    %v355 = vunpack.c.l.b16 %v308
    %v356 = vunpack.c.l.b16 %v309
    %v357 = vunpack.c.l.b16 %v310
    %v358 = vunpack.c.l.b16 %v311
    %v359 = vunpack.c.l.b16 %v312
    %v360 = vunpack.c.l.b16 %v313
    %v361 = vunpack.c.l.b16 %v314
    %v362 = vunpack.c.l.b16 %v315
    %v363 = vunpack.c.l.b16 %v316
    %v364 = vunpack.c.l.b16 %v317
    %v365 = vunpack.c.l.b16 %v318
    %v366 = vunpack.c.l.b16 %v319
    %v367 = vpack.c.b16 %v352, %v351
    %v368 = vpack.c.b16 %v354, %v353
    %v369 = vpack.c.b16 %v356, %v355
    %v370 = vpack.c.b16 %v358, %v357
    %v371 = vpack.c.b16 %v360, %v359
    %v372 = vpack.c.b16 %v362, %v361
    %v373 = vpack.c.b16 %v364, %v363
    %v374 = vpack.c.b16 %v366, %v365
    %383 = vmatprep.subr.bf16.mxu0 0
    %384 = vmatpush1.bf16.msra.mxu0 %v367
    %385 = vmatprep.subr.bf16.mxu0 0
    %386 = vmatpush1.bf16.msra.mxu0 %v368
    %387 = vmatprep.subr.bf16.mxu0 0
    %388 = vmatpush1.bf16.msra.mxu0 %v369
    %389 = vmatprep.subr.bf16.mxu0 0
    %390 = vmatpush1.bf16.msra.mxu0 %v370
    %391 = vmatprep.subr.bf16.mxu0 0
    %392 = vmatpush1.bf16.msra.mxu0 %v371
    %393 = vmatprep.subr.bf16.mxu0 0
    %394 = vmatpush1.bf16.msra.mxu0 %v372
    %395 = vmatprep.subr.bf16.mxu0 0
    %396 = vmatpush1.bf16.msra.mxu0 %v373
    %397 = vmatprep.subr.bf16.mxu0 0
    %398 = vmatpush1.bf16.msra.mxu0 %v374
    %399 = vmatprep.subr.bf16.mxu0 0
    %400 = vmatpush1.bf16.msra.mxu0 0
    %401 = vmatprep.subr.bf16.mxu0 0
    %402 = vmatpush1.bf16.msra.mxu0 0
    %403 = vmatprep.subr.bf16.mxu0 0
    %404 = vmatpush1.bf16.msra.mxu0 0
    %405 = vmatprep.subr.bf16.mxu0 0
    %406 = vmatpush1.bf16.msra.mxu0 0
    %407 = vmatprep.subr.bf16.mxu0 0
    %408 = vmatpush1.bf16.msra.mxu0 0
    %409 = vmatprep.subr.bf16.mxu0 0
    %410 = vmatpush1.bf16.msra.mxu0 0
    %411 = vmatprep.subr.bf16.mxu0 0
    %412 = vmatpush1.bf16.msra.mxu0 0
    %413 = vmatprep.subr.bf16.mxu0 0
    %414 = vmatpush1.bf16.msra.mxu0 0
    %415 = vmatprep.mubr.bf16.mxu0 0
    %416 = vmatmul.mubr.bf16.gmra.mrb[0].mxu0 %v333
    %v417 = vpop.f32.mrb[0].mxu0
    %v418 = vadd.f32 %v325, %v417
    %v419 = vpop.f32.mrb[0].mxu0
    %v420 = vpop.f32.mrb[0].mxu0
    %v421 = vpop.f32.mrb[0].mxu0
    %422 = vdwg.mxu0
    %423 = vst [vmem:[#allocation10] sm:$0x3] %v418
    // Predicated region
    $region38: #{tpu_custom_call.1} parent=1 // pred_check
      _
    $region39: #{tpu_custom_call.1} parent=1 // pred_check_branch
      %425 = sbr.rel (0) target = $region41
    $region40: #{tpu_custom_call.1} parent=1 // pred_region
      %s427 = ssub.s32 32, 32
      %428 = vsyncadd [#allocation4], %s427
      %s430 = sshll.u32 [#allocation10], 4
      %s431 = int_to_ptr.vmem [resolvable:$true] %s430
      %433 = dma.vmem_to_hbm [thread:$0]  %s431, 32, %s5, [#allocation4]
    $region41: #{tpu_custom_call.1} parent=1 // pred_fallthru
      _
    // Predicated region
    $region42: #{tpu_custom_call.1} parent=1 // pred_check
      _
    $region43: #{tpu_custom_call.1} parent=1 // pred_check_branch
      %435 = sbr.rel (0) target = $region45
    $region44: #{tpu_custom_call.1} parent=1 // pred_region
      %436 = dma.done [#allocation4], 32
    $region45: #{tpu_custom_call.1} parent=1 // pred_fallthru
      _
    %437 = vsyncpa [#allocation3], 1
    %438 = vsyncpa [#allocation6], 1
    %439 = vsyncpa [#allocation9], 1
    %440 = vsyncpa [#allocation4], 1

</llo_original>
